<compile_context>
chip_gen: v7x
topology: tpu7x:2x2x1
jax: 0.10.0
libtpu: 0.0.40
codegen_flags: <defaults>
</compile_context>

<pallas_src>
import functools

import jax
import jax.numpy as jnp
from jax.experimental import pallas as pl
from jax.experimental.pallas import tpu as pltpu

PAD = 128          # lane / padded feature width
NEG_SLOPE = 0.01   # nn.LeakyReLU() default


def _leaky(z):
    return jnp.where(z > 0, z, NEG_SLOPE * z)


def _round_up(x, m):
    return -(-x // m) * m


def _tiling(batch):
    """Pick (tile_b, b_pad): tiles are multiples of 128 rows, capped at 2048,
    and large batches always get >= 2 grid steps (v7x: 2 TensorCores)."""
    b128 = _round_up(batch, 128)
    if b128 <= 256:
        return b128, b128                      # one small tile
    n_tiles = max(2, -(-b128 // 2048))         # >= 2 steps; waste < 128 rows/tile
    tile_b = _round_up(-(-b128 // n_tiles), 128)
    return tile_b, tile_b * n_tiles


def make_disc_kernel(dims, compute_dtype):
    """dims = (nin, h1, ..., 1). Layer 0 on the VPU, the rest on the MXU."""
    nin = dims[0]
    n_mm = len(dims) - 2   # layers computed on the MXU (all but the first)

    def kernel(x_ref, sp_ref, slab_ref, o_ref):
        x = x_ref[...]       # (tile_b, nin) f32 raw input
        sp = sp_ref[...]     # (8, 128) f32: rows [0,nin)=W0, row nin=b0

        # ---- layer 0 on the VPU: z0 = sum_c x[:, c] * W0[c, :] + b0 ---------
        z = x[:, 0:1] * sp[0:1, :] + sp[nin:nin + 1, :]
        for c in range(1, nin):
            z = z + x[:, c:c + 1] * sp[c:c + 1, :]
        # Padded lanes of z are exactly 0 (sp is zero-padded); turn lane
        # dims[1] into the "ones" column that multiplies the next layer's
        # folded bias row.
        lane = jax.lax.broadcasted_iota(jnp.int32, z.shape, 1)
        h = jnp.where(lane == dims[1], 1.0, _leaky(z))

        # ---- remaining layers on the MXU (bf16 inputs, f32 accumulation) ----
        # slab_ref[m]: rows [0, K)=W, row K=bias, everything else 0.
        for m in range(n_mm):
            z = jnp.dot(h.astype(compute_dtype), slab_ref[m],
                        preferred_element_type=jnp.float32)
            if m < n_mm - 1:
                h = jnp.where(lane == dims[m + 2], 1.0, _leaky(z))

        # ---- sigmoid(x) = 0.5*(1 + tanh(x/2)): one EUP transcendental -------
        o_ref[...] = 0.5 * jnp.tanh(0.5 * z[:, :1]) + 0.5

    return kernel


def pack_params(params, *, compute_dtype=jnp.bfloat16):
    """Pack [(W (in,out), b (out,)), ...] ONCE (hoisted out of the call path).

    Returns:
      small: (8, 128) f32   -- layer 0: rows [0,nin)=W0, row nin=b0.
      slab : (L-1, 128, 128) compute_dtype -- layers 1..L-1, bias in row K.
    """
    dims = [params[0][0].shape[0]] + [w.shape[1] for w, _ in params]
    assert len(params) >= 2, "need at least one MXU layer"
    assert dims[0] + 1 <= 8, "layer-0 params must fit one (8,128) sublane tile"
    assert all(d + 1 <= PAD for d in dims[:-1]) and dims[-1] <= PAD, \
        "bias-fold requires layer width + 1 <= 128"

    w0, b0 = params[0]
    small = jnp.concatenate([w0, b0[None, :]], axis=0)                 # (nin+1, h1)
    small = jnp.pad(small, ((0, 8 - small.shape[0]),
                            (0, PAD - small.shape[1]))).astype(jnp.float32)

    blocks = []
    for w, b in params[1:]:
        wb = jnp.concatenate([w, b[None, :]], axis=0)                  # (K+1, N)
        blocks.append(jnp.pad(wb, ((0, PAD - wb.shape[0]),
                                   (0, PAD - wb.shape[1]))))
    slab = jnp.stack(blocks).astype(compute_dtype)
    return small, slab


def gan_discriminator_forward(x, small, slab, *, dims, compute_dtype=jnp.bfloat16):
    """x: (batch, nin) f32. small/slab: from pack_params. Returns (batch, 1)."""
    batch, nin = x.shape
    assert nin == dims[0]
    n_mm = len(dims) - 2
    tile_b, b_pad = _tiling(batch)

    if b_pad != batch:
        # Row-pad only (8 B/row). Padded rows yield well-defined junk that is
        # sliced off below.
        x = jnp.pad(x, ((0, b_pad - batch), (0, 0)))

    out = pl.pallas_call(
        make_disc_kernel(tuple(dims), compute_dtype),
        out_shape=jax.ShapeDtypeStruct((b_pad, 1), jnp.float32),
        grid=(b_pad // tile_b,),
        in_specs=[
            # Raw, un-lane-padded input tile (last dim == full extent is legal).
            pl.BlockSpec((tile_b, nin), lambda i: (i, 0)),
            # Layer-0 params (f32), grid-invariant.
            pl.BlockSpec((8, PAD), lambda i: (0, 0)),
            # Packed hidden/output slab, grid-invariant (not re-DMA'd per step).
            pl.BlockSpec((n_mm, PAD, PAD), lambda i: (0, 0, 0)),
        ],
        out_specs=pl.BlockSpec((tile_b, 1), lambda i: (i, 0)),
        compiler_params=pltpu.CompilerParams(
            dimension_semantics=("parallel",),
        ),
    )(x, small, slab)

    return out[:batch]


def init_params(key, layers):
    """Deterministic synthetic init matching nn.Linear's uniform bound."""
    params = []
    for l1, l2 in zip(layers, layers[1:]):
        kw, kb, key = jax.random.split(key, 3)
        bound = 1.0 / jnp.sqrt(l1)
        w = jax.random.uniform(kw, (l1, l2), jnp.float32, -bound, bound)
        b = jax.random.uniform(kb, (l2,), jnp.float32, -bound, bound)
        params.append((w, b))
    return params


def reference_forward(x, params):
    h = x
    for i, (w, b) in enumerate(params):
        h = jnp.dot(h, w, precision=jax.lax.Precision.HIGHEST) + b
        if i < len(params) - 1:
            h = jnp.where(h > 0, h, NEG_SLOPE * h)
    return jax.nn.sigmoid(h)


if __name__ == "__main__":
    layers = [2, 24, 24, 24, 1]   # nin=2, nh=[24,24,24], out=1

    key = jax.random.PRNGKey(0)
    kx, kx2, kp = jax.random.split(key, 3)
    params = init_params(kp, layers)

    # Pack once (hoisted out of the per-call path), jit the forward.
    small_bf16, slab_bf16 = pack_params(params, compute_dtype=jnp.bfloat16)
    small_f32, slab_f32 = pack_params(params, compute_dtype=jnp.float32)

    fwd_bf16 = jax.jit(functools.partial(
        gan_discriminator_forward, dims=tuple(layers), compute_dtype=jnp.bfloat16))
    fwd_f32 = jax.jit(functools.partial(
        gan_discriminator_forward, dims=tuple(layers), compute_dtype=jnp.float32))

    # --- small single-tile batch -------------------------------------------
    x = jax.random.normal(kx, (8, 2), jnp.float32)
    ref = reference_forward(x, params)

    out = jax.block_until_ready(fwd_bf16(x, small_bf16, slab_bf16))
    assert out.shape == (8, 1), out.shape
    assert jnp.allclose(out, ref, atol=1e-2, rtol=1e-2), float(jnp.max(jnp.abs(out - ref)))

    # f32-compute variant of the same kernel: strict semantic check.
    out32 = jax.block_until_ready(fwd_f32(x, small_f32, slab_f32))
    assert jnp.allclose(out32, ref, atol=1e-5, rtol=1e-5), float(jnp.max(jnp.abs(out32 - ref)))

    # --- multi-tile batch (row padding + >= 2 grid steps / v7x sharding) ----
    x2 = jax.random.normal(kx2, (400, 2), jnp.float32)
    ref2 = reference_forward(x2, params)
    out2 = jax.block_until_ready(fwd_bf16(x2, small_bf16, slab_bf16))
    assert out2.shape == (400, 1), out2.shape
    assert jnp.allclose(out2, ref2, atol=1e-2, rtol=1e-2), float(jnp.max(jnp.abs(out2 - ref2)))

    print("KERNEL_OK")
</pallas_src>

<mosaic_0001>
module attributes {stable_mosaic.version = 11 : i64} {
  func.func @kernel(%arg0: i32, %arg1: memref<128x2xf32, #tpu.memory_space<vmem>>, %arg2: memref<8x128xf32, #tpu.memory_space<vmem>>, %arg3: memref<3x128x128xbf16, #tpu.memory_space<vmem>>, %arg4: memref<128x1xf32, #tpu.memory_space<vmem>>) attributes {dimension_semantics = [#tpu.dimension_semantics<parallel>], iteration_bounds = array<i64: 1>, scalar_prefetch = 0 : i64, scratch_operands = 0 : i64, tpu.core_type = #tpu.core_type<tc>, window_params = [{transform_indices = @transform_0, window_bounds = array<i64: 128, 2>}, {pipeline_mode = #tpu.pipeline_mode<synchronous>, transform_indices = @transform_1, window_bounds = array<i64: 8, 128>}, {pipeline_mode = #tpu.pipeline_mode<synchronous>, transform_indices = @transform_2, window_bounds = array<i64: 3, 128, 128>}, {transform_indices = @transform_3, window_bounds = array<i64: 128, 1>}]} {
    %c0 = arith.constant 0 : index
    %c0_0 = arith.constant 0 : index
    %0 = vector.load %arg1[%c0, %c0_0] : memref<128x2xf32, #tpu.memory_space<vmem>>, vector<128x2xf32>
    %c0_1 = arith.constant 0 : index
    %c0_2 = arith.constant 0 : index
    %1 = vector.load %arg2[%c0_1, %c0_2] : memref<8x128xf32, #tpu.memory_space<vmem>>, vector<8x128xf32>
    %2 = vector.extract_strided_slice %0 {offsets = [0, 0], sizes = [128, 1], strides = [1, 1]} : vector<128x2xf32> to vector<128x1xf32>
    %3 = vector.extract_strided_slice %1 {offsets = [0, 0], sizes = [1, 128], strides = [1, 1]} : vector<8x128xf32> to vector<1x128xf32>
    %4 = vector.broadcast %2 : vector<128x1xf32> to vector<128x128xf32>
    %5 = vector.broadcast %3 : vector<1x128xf32> to vector<128x128xf32>
    %6 = arith.mulf %4, %5 : vector<128x128xf32>
    %7 = vector.extract_strided_slice %1 {offsets = [2, 0], sizes = [1, 128], strides = [1, 1]} : vector<8x128xf32> to vector<1x128xf32>
    %8 = vector.broadcast %7 : vector<1x128xf32> to vector<128x128xf32>
    %9 = arith.addf %6, %8 : vector<128x128xf32>
    %10 = vector.extract_strided_slice %0 {offsets = [0, 1], sizes = [128, 1], strides = [1, 1]} : vector<128x2xf32> to vector<128x1xf32>
    %11 = vector.extract_strided_slice %1 {offsets = [1, 0], sizes = [1, 128], strides = [1, 1]} : vector<8x128xf32> to vector<1x128xf32>
    %12 = vector.broadcast %10 : vector<128x1xf32> to vector<128x128xf32>
    %13 = vector.broadcast %11 : vector<1x128xf32> to vector<128x128xf32>
    %14 = arith.mulf %12, %13 : vector<128x128xf32>
    %15 = arith.addf %9, %14 : vector<128x128xf32>
    %16 = tpu.iota {dimensions = array<i32: 1>} : vector<128x128xi32>
    %c24_i32 = arith.constant 24 : i32
    %17 = vector.broadcast %c24_i32 : i32 to vector<128x128xi32>
    %18 = arith.cmpi eq, %16, %17 : vector<128x128xi32>
    %cst = arith.constant 0.000000e+00 : f32
    %19 = vector.broadcast %cst : f32 to vector<128x128xf32>
    %20 = arith.cmpf ogt, %15, %19 : vector<128x128xf32>
    %cst_3 = arith.constant 0.00999999977 : f32
    %21 = vector.broadcast %cst_3 : f32 to vector<128x128xf32>
    %22 = arith.mulf %21, %15 : vector<128x128xf32>
    %23 = arith.select %20, %15, %22 : vector<128x128xi1>, vector<128x128xf32>
    %cst_4 = arith.constant 1.000000e+00 : f32
    %24 = vector.broadcast %cst_4 : f32 to vector<128x128xf32>
    %25 = arith.select %18, %24, %23 : vector<128x128xi1>, vector<128x128xf32>
    %26 = arith.truncf %25 : vector<128x128xf32> to vector<128x128xbf16>
    %c0_5 = arith.constant 0 : index
    %c0_6 = arith.constant 0 : index
    %c0_7 = arith.constant 0 : index
    %27 = vector.load %arg3[%c0_5, %c0_6, %c0_7] : memref<3x128x128xbf16, #tpu.memory_space<vmem>>, vector<1x128x128xbf16>
    %28 = vector.shape_cast %27 : vector<1x128x128xbf16> to vector<128x128xbf16>
    %cst_8 = arith.constant dense<0.000000e+00> : vector<128x128xf32>
    %29 = tpu.matmul %26, %28, %cst_8 {dimension_numbers = #tpu.dot_dimension_numbers<[1], [0], [0], [1], [0, 0, 1, 1], [], []>} : vector<128x128xbf16>, vector<128x128xbf16>, vector<128x128xf32> -> vector<128x128xf32>
    %c24_i32_9 = arith.constant 24 : i32
    %30 = vector.broadcast %c24_i32_9 : i32 to vector<128x128xi32>
    %31 = arith.cmpi eq, %16, %30 : vector<128x128xi32>
    %cst_10 = arith.constant 0.000000e+00 : f32
    %32 = vector.broadcast %cst_10 : f32 to vector<128x128xf32>
    %33 = arith.cmpf ogt, %29, %32 : vector<128x128xf32>
    %cst_11 = arith.constant 0.00999999977 : f32
    %34 = vector.broadcast %cst_11 : f32 to vector<128x128xf32>
    %35 = arith.mulf %34, %29 : vector<128x128xf32>
    %36 = arith.select %33, %29, %35 : vector<128x128xi1>, vector<128x128xf32>
    %cst_12 = arith.constant 1.000000e+00 : f32
    %37 = vector.broadcast %cst_12 : f32 to vector<128x128xf32>
    %38 = arith.select %31, %37, %36 : vector<128x128xi1>, vector<128x128xf32>
    %39 = arith.truncf %38 : vector<128x128xf32> to vector<128x128xbf16>
    %c1 = arith.constant 1 : index
    %c0_13 = arith.constant 0 : index
    %c0_14 = arith.constant 0 : index
    %40 = vector.load %arg3[%c1, %c0_13, %c0_14] : memref<3x128x128xbf16, #tpu.memory_space<vmem>>, vector<1x128x128xbf16>
    %41 = vector.shape_cast %40 : vector<1x128x128xbf16> to vector<128x128xbf16>
    %cst_15 = arith.constant dense<0.000000e+00> : vector<128x128xf32>
    %42 = tpu.matmul %39, %41, %cst_15 {dimension_numbers = #tpu.dot_dimension_numbers<[1], [0], [0], [1], [0, 0, 1, 1], [], []>} : vector<128x128xbf16>, vector<128x128xbf16>, vector<128x128xf32> -> vector<128x128xf32>
    %c24_i32_16 = arith.constant 24 : i32
    %43 = vector.broadcast %c24_i32_16 : i32 to vector<128x128xi32>
    %44 = arith.cmpi eq, %16, %43 : vector<128x128xi32>
    %cst_17 = arith.constant 0.000000e+00 : f32
    %45 = vector.broadcast %cst_17 : f32 to vector<128x128xf32>
    %46 = arith.cmpf ogt, %42, %45 : vector<128x128xf32>
    %cst_18 = arith.constant 0.00999999977 : f32
    %47 = vector.broadcast %cst_18 : f32 to vector<128x128xf32>
    %48 = arith.mulf %47, %42 : vector<128x128xf32>
    %49 = arith.select %46, %42, %48 : vector<128x128xi1>, vector<128x128xf32>
    %cst_19 = arith.constant 1.000000e+00 : f32
    %50 = vector.broadcast %cst_19 : f32 to vector<128x128xf32>
    %51 = arith.select %44, %50, %49 : vector<128x128xi1>, vector<128x128xf32>
    %52 = arith.truncf %51 : vector<128x128xf32> to vector<128x128xbf16>
    %c2 = arith.constant 2 : index
    %c0_20 = arith.constant 0 : index
    %c0_21 = arith.constant 0 : index
    %53 = vector.load %arg3[%c2, %c0_20, %c0_21] : memref<3x128x128xbf16, #tpu.memory_space<vmem>>, vector<1x128x128xbf16>
    %54 = vector.shape_cast %53 : vector<1x128x128xbf16> to vector<128x128xbf16>
    %cst_22 = arith.constant dense<0.000000e+00> : vector<128x128xf32>
    %55 = tpu.matmul %52, %54, %cst_22 {dimension_numbers = #tpu.dot_dimension_numbers<[1], [0], [0], [1], [0, 0, 1, 1], [], []>} : vector<128x128xbf16>, vector<128x128xbf16>, vector<128x128xf32> -> vector<128x128xf32>
    %56 = vector.extract_strided_slice %55 {offsets = [0, 0], sizes = [128, 1], strides = [1, 1]} : vector<128x128xf32> to vector<128x1xf32>
    %cst_23 = arith.constant 5.000000e-01 : f32
    %57 = vector.broadcast %cst_23 : f32 to vector<128x1xf32>
    %58 = arith.mulf %57, %56 : vector<128x1xf32>
    %59 = math.tanh %58 : vector<128x1xf32>
    %cst_24 = arith.constant 5.000000e-01 : f32
    %60 = vector.broadcast %cst_24 : f32 to vector<128x1xf32>
    %61 = arith.mulf %60, %59 : vector<128x1xf32>
    %cst_25 = arith.constant 5.000000e-01 : f32
    %62 = vector.broadcast %cst_25 : f32 to vector<128x1xf32>
    %63 = arith.addf %61, %62 : vector<128x1xf32>
    %c0_26 = arith.constant 0 : index
    %c0_27 = arith.constant 0 : index
    %64 = vector.load %arg4[%c0_26, %c0_27] : memref<128x1xf32, #tpu.memory_space<vmem>>, vector<128x1xf32>
    tpu.vector_store %arg4[%c0_26, %c0_27], %63 {strides = array<i32>} : memref<128x1xf32, #tpu.memory_space<vmem>>, vector<128x1xf32>,
    return
  }
  func.func @transform_0(%arg0: i32) -> (i32, i32) {
    %c0_i32 = arith.constant 0 : i32
    %c0_i32_0 = arith.constant 0 : i32
    return %arg0, %c0_i32 : i32, i32
  }
  func.func @transform_1(%arg0: i32) -> (i32, i32) {
    %c0_i32 = arith.constant 0 : i32
    %c0_i32_0 = arith.constant 0 : i32
    %c0_i32_1 = arith.constant 0 : i32
    return %c0_i32, %c0_i32_0 : i32, i32
  }
  func.func @transform_2(%arg0: i32) -> (i32, i32, i32) {
    %c0_i32 = arith.constant 0 : i32
    %c0_i32_0 = arith.constant 0 : i32
    %c0_i32_1 = arith.constant 0 : i32
    %c0_i32_2 = arith.constant 0 : i32
    return %c0_i32, %c0_i32_0, %c0_i32_1 : i32, i32, i32
  }
  func.func @transform_3(%arg0: i32) -> (i32, i32) {
    %c0_i32 = arith.constant 0 : i32
    %c0_i32_0 = arith.constant 0 : i32
    return %arg0, %c0_i32 : i32, i32
  }
}

</mosaic_0001>

<llo_original>
// kernel: gan_discriminator_forward.1
$region0: #{gan_discriminator_forward.1}
  #allocation0 [shape = 'u32[]', space=smem, size = 0x4, offset = 0x4, fixed_abs, tag = 'smem constant byte address 0x4 - core index']
  #allocation1 [shape = 'u32[144,128]{1,0:T(1,128)}', space=vmem, size = 0x12000, scoped, tag = 'internal scratch']
  %s0 = inlined_call_operand.vmem [shape: f32[128,2], index: 0, kind: input, shape index: {}]
  %s1 = inlined_call_operand.vmem [shape: f32[8,128], index: 1, kind: input, shape index: {}]
  %s2 = inlined_call_operand.hbm [shape: bf16[3,128,128], index: 2, kind: input, shape index: {}]
  %s3 = inlined_call_operand.vmem [shape: f32[128,1], index: 3, kind: output, shape index: {}]
  %s4 = sld [smem:[#allocation0]]
  $region26: #{gan_discriminator_forward.1} parent=0
    _
  %s6 = ssub.s32 1, %s4
  %s7 = scalar_select 0, %s6, %s4
  $region1: #{gan_discriminator_forward.1} parent=0
    #allocation2 [shape = 'u8[98304]{0}', space=vmem, size = 0x18000, scoped, tag = 'input window, operand 2, single buffered']
    #allocation3 [shape = 's32[1]{0}', space=sflag, size = 0x4, scoped, tag = 'scoped memory for gan_discriminator_forward.1']
    %8 = vsyncpa [#allocation3], 0
    // Predicated region
    $region2: #{gan_discriminator_forward.1} parent=1 // pred_check
      _
    $region3: #{gan_discriminator_forward.1} parent=1 // pred_check_branch
      %10 = sbr.rel (0) target = $region5
    $region4: #{gan_discriminator_forward.1} parent=1 // pred_region
      _
    $region5: #{gan_discriminator_forward.1} parent=1 // pred_fallthru
      _
    // Predicated region
    $region6: #{gan_discriminator_forward.1} parent=1 // pred_check
      _
    $region7: #{gan_discriminator_forward.1} parent=1 // pred_check_branch
      %12 = sbr.rel (0) target = $region9
    $region8: #{gan_discriminator_forward.1} parent=1 // pred_region
      _
    $region9: #{gan_discriminator_forward.1} parent=1 // pred_fallthru
      _
    // Predicated region
    $region10: #{gan_discriminator_forward.1} parent=1 // pred_check
      _
    $region11: #{gan_discriminator_forward.1} parent=1 // pred_check_branch
      %14 = sbr.rel (0) target = $region13
    $region12: #{gan_discriminator_forward.1} parent=1 // pred_region
      %s16 = ssub.s32 3072, 3072
      %17 = vsyncadd [#allocation3], %s16
      %s18 = sshll.u32 [#allocation2], 4
      %s19 = int_to_ptr.vmem [resolvable:$true] %s18
      %24 = dma.hbm_to_vmem [thread:$0]  %s2, 3072, %s19, [#allocation3], 64, 64, 4
    $region13: #{gan_discriminator_forward.1} parent=1 // pred_fallthru
      _
    // Predicated region
    $region14: #{gan_discriminator_forward.1} parent=1 // pred_check
      _
    $region15: #{gan_discriminator_forward.1} parent=1 // pred_check_branch
      %26 = sbr.rel (0) target = $region17
    $region16: #{gan_discriminator_forward.1} parent=1 // pred_region
      %27 = dma.done [#allocation3], 3072
    $region17: #{gan_discriminator_forward.1} parent=1 // pred_fallthru
      _
    %v29 = vld [vmem:[%s0] sm:$0xff]
    %v30 = vld [vmem:[%s0 + $0x8] sm:$0xff]
    %v31 = vld [vmem:[%s0 + $0x10] sm:$0xff]
    %v32 = vld [vmem:[%s0 + $0x18] sm:$0xff]
    %v33 = vld [vmem:[%s0 + $0x20] sm:$0xff]
    %v34 = vld [vmem:[%s0 + $0x28] sm:$0xff]
    %v35 = vld [vmem:[%s0 + $0x30] sm:$0xff]
    %v36 = vld [vmem:[%s0 + $0x38] sm:$0xff]
    %v37 = vld [vmem:[%s0 + $0x40] sm:$0xff]
    %v38 = vld [vmem:[%s0 + $0x48] sm:$0xff]
    %v39 = vld [vmem:[%s0 + $0x50] sm:$0xff]
    %v40 = vld [vmem:[%s0 + $0x58] sm:$0xff]
    %v41 = vld [vmem:[%s0 + $0x60] sm:$0xff]
    %v42 = vld [vmem:[%s0 + $0x68] sm:$0xff]
    %v43 = vld [vmem:[%s0 + $0x70] sm:$0xff]
    %v44 = vld [vmem:[%s0 + $0x78] sm:$0xff]
    %v45 = vld [vmem:[%s1] sm:$0xff]
    %47 = vset.pattern.permute.xlu0 0
    %48 = vperm.xlu0 %47, %v29
    %v49 = vpop.permute.xlu0 %48
    %52 = vset.pattern.permute.xlu0 0
    %53 = vperm.xlu0 %52, %v30
    %v54 = vpop.permute.xlu0 %53
    %57 = vset.pattern.permute.xlu0 0
    %58 = vperm.xlu0 %57, %v31
    %v59 = vpop.permute.xlu0 %58
    %62 = vset.pattern.permute.xlu0 0
    %63 = vperm.xlu0 %62, %v32
    %v64 = vpop.permute.xlu0 %63
    %67 = vset.pattern.permute.xlu0 0
    %68 = vperm.xlu0 %67, %v33
    %v69 = vpop.permute.xlu0 %68
    %72 = vset.pattern.permute.xlu0 0
    %73 = vperm.xlu0 %72, %v34
    %v74 = vpop.permute.xlu0 %73
    %77 = vset.pattern.permute.xlu0 0
    %78 = vperm.xlu0 %77, %v35
    %v79 = vpop.permute.xlu0 %78
    %82 = vset.pattern.permute.xlu0 0
    %83 = vperm.xlu0 %82, %v36
    %v84 = vpop.permute.xlu0 %83
    %87 = vset.pattern.permute.xlu0 0
    %88 = vperm.xlu0 %87, %v37
    %v89 = vpop.permute.xlu0 %88
    %92 = vset.pattern.permute.xlu0 0
    %93 = vperm.xlu0 %92, %v38
    %v94 = vpop.permute.xlu0 %93
    %97 = vset.pattern.permute.xlu0 0
    %98 = vperm.xlu0 %97, %v39
    %v99 = vpop.permute.xlu0 %98
    %102 = vset.pattern.permute.xlu0 0
    %103 = vperm.xlu0 %102, %v40
    %v104 = vpop.permute.xlu0 %103
    %107 = vset.pattern.permute.xlu0 0
    %108 = vperm.xlu0 %107, %v41
    %v109 = vpop.permute.xlu0 %108
    %112 = vset.pattern.permute.xlu0 0
    %113 = vperm.xlu0 %112, %v42
    %v114 = vpop.permute.xlu0 %113
    %117 = vset.pattern.permute.xlu0 0
    %118 = vperm.xlu0 %117, %v43
    %v119 = vpop.permute.xlu0 %118
    %122 = vset.pattern.permute.xlu0 0
    %123 = vperm.xlu0 %122, %v44
    %v124 = vpop.permute.xlu0 %123
    %v126 = vlaneseq
    %v127 = vshrl.u32 %v126, 7
    %v128 = vsub.s32 0, %v127
    %v129 = vrot.slane %v45, %v128
    %v130 = vmul.f32 %v49, %v129
    %v131 = vmul.f32 %v54, %v129
    %v132 = vmul.f32 %v59, %v129
    %v133 = vmul.f32 %v64, %v129
    %v134 = vmul.f32 %v69, %v129
    %v135 = vmul.f32 %v74, %v129
    %v136 = vmul.f32 %v79, %v129
    %v137 = vmul.f32 %v84, %v129
    %v138 = vmul.f32 %v89, %v129
    %v139 = vmul.f32 %v94, %v129
    %v140 = vmul.f32 %v99, %v129
    %v141 = vmul.f32 %v104, %v129
    %v142 = vmul.f32 %v109, %v129
    %v143 = vmul.f32 %v114, %v129
    %v144 = vmul.f32 %v119, %v129
    %v145 = vmul.f32 %v124, %v129
    %v146 = vlaneseq
    %v147 = vshrl.u32 %v146, 7
    %v148 = vsub.s32 2, %v147
    %v149 = vrot.slane %v45, %v148
    %v150 = vadd.f32 %v130, %v149
    %v151 = vadd.f32 %v131, %v149
    %v152 = vadd.f32 %v132, %v149
    %v153 = vadd.f32 %v133, %v149
    %v154 = vadd.f32 %v134, %v149
    %v155 = vadd.f32 %v135, %v149
    %v156 = vadd.f32 %v136, %v149
    %v157 = vadd.f32 %v137, %v149
    %v158 = vadd.f32 %v138, %v149
    %v159 = vadd.f32 %v139, %v149
    %v160 = vadd.f32 %v140, %v149
    %v161 = vadd.f32 %v141, %v149
    %v162 = vadd.f32 %v142, %v149
    %v163 = vadd.f32 %v143, %v149
    %v164 = vadd.f32 %v144, %v149
    %v165 = vadd.f32 %v145, %v149
    %166 = vset.pattern.permute.xlu0 1
    %167 = vperm.xlu0 %166, %v29
    %v168 = vpop.permute.xlu0 %167
    %170 = vset.pattern.permute.xlu0 1
    %171 = vperm.xlu0 %170, %v30
    %v172 = vpop.permute.xlu0 %171
    %174 = vset.pattern.permute.xlu0 1
    %175 = vperm.xlu0 %174, %v31
    %v176 = vpop.permute.xlu0 %175
    %178 = vset.pattern.permute.xlu0 1
    %179 = vperm.xlu0 %178, %v32
    %v180 = vpop.permute.xlu0 %179
    %182 = vset.pattern.permute.xlu0 1
    %183 = vperm.xlu0 %182, %v33
    %v184 = vpop.permute.xlu0 %183
    %186 = vset.pattern.permute.xlu0 1
    %187 = vperm.xlu0 %186, %v34
    %v188 = vpop.permute.xlu0 %187
    %190 = vset.pattern.permute.xlu0 1
    %191 = vperm.xlu0 %190, %v35
    %v192 = vpop.permute.xlu0 %191
    %194 = vset.pattern.permute.xlu0 1
    %195 = vperm.xlu0 %194, %v36
    %v196 = vpop.permute.xlu0 %195
    %198 = vset.pattern.permute.xlu0 1
    %199 = vperm.xlu0 %198, %v37
    %v200 = vpop.permute.xlu0 %199
    %202 = vset.pattern.permute.xlu0 1
    %203 = vperm.xlu0 %202, %v38
    %v204 = vpop.permute.xlu0 %203
    %206 = vset.pattern.permute.xlu0 1
    %207 = vperm.xlu0 %206, %v39
    %v208 = vpop.permute.xlu0 %207
    %210 = vset.pattern.permute.xlu0 1
    %211 = vperm.xlu0 %210, %v40
    %v212 = vpop.permute.xlu0 %211
    %214 = vset.pattern.permute.xlu0 1
    %215 = vperm.xlu0 %214, %v41
    %v216 = vpop.permute.xlu0 %215
    %218 = vset.pattern.permute.xlu0 1
    %219 = vperm.xlu0 %218, %v42
    %v220 = vpop.permute.xlu0 %219
    %222 = vset.pattern.permute.xlu0 1
    %223 = vperm.xlu0 %222, %v43
    %v224 = vpop.permute.xlu0 %223
    %226 = vset.pattern.permute.xlu0 1
    %227 = vperm.xlu0 %226, %v44
    %v228 = vpop.permute.xlu0 %227
    %v230 = vlaneseq
    %v231 = vshrl.u32 %v230, 7
    %v232 = vsub.s32 1, %v231
    %v233 = vrot.slane %v45, %v232
    %v234 = vmul.f32 %v168, %v233
    %v235 = vmul.f32 %v172, %v233
    %v236 = vmul.f32 %v176, %v233
    %v237 = vmul.f32 %v180, %v233
    %v238 = vmul.f32 %v184, %v233
    %v239 = vmul.f32 %v188, %v233
    %v240 = vmul.f32 %v192, %v233
    %v241 = vmul.f32 %v196, %v233
    %v242 = vmul.f32 %v200, %v233
    %v243 = vmul.f32 %v204, %v233
    %v244 = vmul.f32 %v208, %v233
    %v245 = vmul.f32 %v212, %v233
    %v246 = vmul.f32 %v216, %v233
    %v247 = vmul.f32 %v220, %v233
    %v248 = vmul.f32 %v224, %v233
    %v249 = vmul.f32 %v228, %v233
    %v250 = vadd.f32 %v150, %v234
    %v251 = vadd.f32 %v151, %v235
    %v252 = vadd.f32 %v152, %v236
    %v253 = vadd.f32 %v153, %v237
    %v254 = vadd.f32 %v154, %v238
    %v255 = vadd.f32 %v155, %v239
    %v256 = vadd.f32 %v156, %v240
    %v257 = vadd.f32 %v157, %v241
    %v258 = vadd.f32 %v158, %v242
    %v259 = vadd.f32 %v159, %v243
    %v260 = vadd.f32 %v160, %v244
    %v261 = vadd.f32 %v161, %v245
    %v262 = vadd.f32 %v162, %v246
    %v263 = vadd.f32 %v163, %v247
    %v264 = vadd.f32 %v164, %v248
    %v265 = vadd.f32 %v165, %v249
    %v266 = vlaneseq
    %v267 = vand.u32 %v266, 127
    %vm268 = vcmp.eq.s32.totalorder %v267, 24
    %vm269 = vcmp.gt.f32.partialorder %v250, 0.0
    %vm270 = vcmp.gt.f32.partialorder %v251, 0.0
    %vm271 = vcmp.gt.f32.partialorder %v252, 0.0
    %vm272 = vcmp.gt.f32.partialorder %v253, 0.0
    %vm273 = vcmp.gt.f32.partialorder %v254, 0.0
    %vm274 = vcmp.gt.f32.partialorder %v255, 0.0
    %vm275 = vcmp.gt.f32.partialorder %v256, 0.0
    %vm276 = vcmp.gt.f32.partialorder %v257, 0.0
    %vm277 = vcmp.gt.f32.partialorder %v258, 0.0
    %vm278 = vcmp.gt.f32.partialorder %v259, 0.0
    %vm279 = vcmp.gt.f32.partialorder %v260, 0.0
    %vm280 = vcmp.gt.f32.partialorder %v261, 0.0
    %vm281 = vcmp.gt.f32.partialorder %v262, 0.0
    %vm282 = vcmp.gt.f32.partialorder %v263, 0.0
    %vm283 = vcmp.gt.f32.partialorder %v264, 0.0
    %vm284 = vcmp.gt.f32.partialorder %v265, 0.0
    %v285 = vmul.f32 %v250, 0.01
    %v286 = vmul.f32 %v251, 0.01
    %v287 = vmul.f32 %v252, 0.01
    %v288 = vmul.f32 %v253, 0.01
    %v289 = vmul.f32 %v254, 0.01
    %v290 = vmul.f32 %v255, 0.01
    %v291 = vmul.f32 %v256, 0.01
    %v292 = vmul.f32 %v257, 0.01
    %v293 = vmul.f32 %v258, 0.01
    %v294 = vmul.f32 %v259, 0.01
    %v295 = vmul.f32 %v260, 0.01
    %v296 = vmul.f32 %v261, 0.01
    %v297 = vmul.f32 %v262, 0.01
    %v298 = vmul.f32 %v263, 0.01
    %v299 = vmul.f32 %v264, 0.01
    %v300 = vmul.f32 %v265, 0.01
    %v301 = vsel %vm269, %v250, %v285
    %v302 = vsel %vm270, %v251, %v286
    %v303 = vsel %vm271, %v252, %v287
    %v304 = vsel %vm272, %v253, %v288
    %v305 = vsel %vm273, %v254, %v289
    %v306 = vsel %vm274, %v255, %v290
    %v307 = vsel %vm275, %v256, %v291
    %v308 = vsel %vm276, %v257, %v292
    %v309 = vsel %vm277, %v258, %v293
    %v310 = vsel %vm278, %v259, %v294
    %v311 = vsel %vm279, %v260, %v295
    %v312 = vsel %vm280, %v261, %v296
    %v313 = vsel %vm281, %v262, %v297
    %v314 = vsel %vm282, %v263, %v298
    %v315 = vsel %vm283, %v264, %v299
    %v316 = vsel %vm284, %v265, %v300
    %v317 = vsel %vm268, 1.0, %v301
    %v318 = vsel %vm268, 1.0, %v302
    %v319 = vsel %vm268, 1.0, %v303
    %v320 = vsel %vm268, 1.0, %v304
    %v321 = vsel %vm268, 1.0, %v305
    %v322 = vsel %vm268, 1.0, %v306
    %v323 = vsel %vm268, 1.0, %v307
    %v324 = vsel %vm268, 1.0, %v308
    %v325 = vsel %vm268, 1.0, %v309
    %v326 = vsel %vm268, 1.0, %v310
    %v327 = vsel %vm268, 1.0, %v311
    %v328 = vsel %vm268, 1.0, %v312
    %v329 = vsel %vm268, 1.0, %v313
    %v330 = vsel %vm268, 1.0, %v314
    %v331 = vsel %vm268, 1.0, %v315
    %v332 = vsel %vm268, 1.0, %v316
    %v333 = vpack.c.bf16 %v318, %v317
    %v334 = vpack.c.bf16 %v320, %v319
    %v335 = vpack.c.bf16 %v322, %v321
    %v336 = vpack.c.bf16 %v324, %v323
    %v337 = vpack.c.bf16 %v326, %v325
    %v338 = vpack.c.bf16 %v328, %v327
    %v339 = vpack.c.bf16 %v330, %v329
    %v340 = vpack.c.bf16 %v332, %v331
    %v341 = vld [vmem:[#allocation2] sm:$0xf]
    %v342 = vld [vmem:[#allocation2 + $0x4] sm:$0xf]
    %v343 = vld [vmem:[#allocation2 + $0x8] sm:$0xf]
    %v344 = vld [vmem:[#allocation2 + $0xc] sm:$0xf]
    %v345 = vld [vmem:[#allocation2 + $0x10] sm:$0xf]
    %v346 = vld [vmem:[#allocation2 + $0x14] sm:$0xf]
    %v347 = vld [vmem:[#allocation2 + $0x18] sm:$0xf]
    %v348 = vld [vmem:[#allocation2 + $0x1c] sm:$0xf]
    %v349 = vld [vmem:[#allocation2 + $0x20] sm:$0xf]
    %v350 = vld [vmem:[#allocation2 + $0x24] sm:$0xf]
    %v351 = vld [vmem:[#allocation2 + $0x28] sm:$0xf]
    %v352 = vld [vmem:[#allocation2 + $0x2c] sm:$0xf]
    %v353 = vld [vmem:[#allocation2 + $0x30] sm:$0xf]
    %v354 = vld [vmem:[#allocation2 + $0x34] sm:$0xf]
    %v355 = vld [vmem:[#allocation2 + $0x38] sm:$0xf]
    %v356 = vld [vmem:[#allocation2 + $0x3c] sm:$0xf]
    %v373 = vunpack.c.l.b16 %v341
    %v374 = vunpack.c.l.b16 %v342
    %v375 = vunpack.c.l.b16 %v343
    %v376 = vunpack.c.l.b16 %v344
    %v377 = vunpack.c.l.b16 %v345
    %v378 = vunpack.c.l.b16 %v346
    %v379 = vunpack.c.l.b16 %v347
    %v380 = vunpack.c.l.b16 %v348
    %v381 = vunpack.c.l.b16 %v349
    %v382 = vunpack.c.l.b16 %v350
    %v383 = vunpack.c.l.b16 %v351
    %v384 = vunpack.c.l.b16 %v352
    %v385 = vunpack.c.l.b16 %v353
    %v386 = vunpack.c.l.b16 %v354
    %v387 = vunpack.c.l.b16 %v355
    %v388 = vunpack.c.l.b16 %v356
    %v389 = vpack.c.b16 %v374, %v373
    %v390 = vpack.c.b16 %v376, %v375
    %v391 = vpack.c.b16 %v378, %v377
    %v392 = vpack.c.b16 %v380, %v379
    %v393 = vpack.c.b16 %v382, %v381
    %v394 = vpack.c.b16 %v384, %v383
    %v395 = vpack.c.b16 %v386, %v385
    %v396 = vpack.c.b16 %v388, %v387
    %405 = vmatprep.subr.bf16.mxu0 0
    %406 = vmatpush1.bf16.msra.mxu0 %v389
    %407 = vmatprep.subr.bf16.mxu0 0
    %408 = vmatpush1.bf16.msra.mxu0 %v390
    %409 = vmatprep.subr.bf16.mxu0 0
    %410 = vmatpush1.bf16.msra.mxu0 %v391
    %411 = vmatprep.subr.bf16.mxu0 0
    %412 = vmatpush1.bf16.msra.mxu0 %v392
    %413 = vmatprep.subr.bf16.mxu0 0
    %414 = vmatpush1.bf16.msra.mxu0 %v393
    %415 = vmatprep.subr.bf16.mxu0 0
    %416 = vmatpush1.bf16.msra.mxu0 %v394
    %417 = vmatprep.subr.bf16.mxu0 0
    %418 = vmatpush1.bf16.msra.mxu0 %v395
    %419 = vmatprep.subr.bf16.mxu0 0
    %420 = vmatpush1.bf16.msra.mxu0 %v396
    %421 = vmatprep.subr.bf16.mxu0 0
    %422 = vmatpush1.bf16.msra.mxu0 0
    %423 = vmatprep.subr.bf16.mxu0 0
    %424 = vmatpush1.bf16.msra.mxu0 0
    %425 = vmatprep.subr.bf16.mxu0 0
    %426 = vmatpush1.bf16.msra.mxu0 0
    %427 = vmatprep.subr.bf16.mxu0 0
    %428 = vmatpush1.bf16.msra.mxu0 0
    %429 = vmatprep.subr.bf16.mxu0 0
    %430 = vmatpush1.bf16.msra.mxu0 0
    %431 = vmatprep.subr.bf16.mxu0 0
    %432 = vmatpush1.bf16.msra.mxu0 0
    %433 = vmatprep.subr.bf16.mxu0 0
    %434 = vmatpush1.bf16.msra.mxu0 0
    %435 = vmatprep.subr.bf16.mxu0 0
    %436 = vmatpush1.bf16.msra.mxu0 0
    %437 = vmatprep.mubr.bf16.mxu0 0
    %438 = vmatmul.mubr.bf16.gmra.mrb[0].mxu0 %v333
    %v439 = vpop.f32.mrb[0].mxu0
    %v440 = vadd.f32 0.0, %v439
    %v441 = vpop.f32.mrb[0].mxu0
    %v442 = vpop.f32.mrb[0].mxu0
    %v443 = vadd.f32 0.0, %v442
    %v444 = vpop.f32.mrb[0].mxu0
    %445 = vmatprep.mubr.bf16.mxu0 0
    %446 = vmatmul.mubr.bf16.gmra.mrb[0].mxu0 %v334
    %v447 = vpop.f32.mrb[0].mxu0
    %v448 = vadd.f32 0.0, %v447
    %v449 = vpop.f32.mrb[0].mxu0
    %v450 = vpop.f32.mrb[0].mxu0
    %v451 = vadd.f32 0.0, %v450
    %v452 = vpop.f32.mrb[0].mxu0
    %453 = vmatprep.mubr.bf16.mxu0 0
    %454 = vmatmul.mubr.bf16.gmra.mrb[0].mxu0 %v335
    %v455 = vpop.f32.mrb[0].mxu0
    %v456 = vadd.f32 0.0, %v455
    %v457 = vpop.f32.mrb[0].mxu0
    %v458 = vpop.f32.mrb[0].mxu0
    %v459 = vadd.f32 0.0, %v458
    %v460 = vpop.f32.mrb[0].mxu0
    %461 = vmatprep.mubr.bf16.mxu0 0
    %462 = vmatmul.mubr.bf16.gmra.mrb[0].mxu0 %v336
    %v463 = vpop.f32.mrb[0].mxu0
    %v464 = vadd.f32 0.0, %v463
    %v465 = vpop.f32.mrb[0].mxu0
    %v466 = vpop.f32.mrb[0].mxu0
    %v467 = vadd.f32 0.0, %v466
    %v468 = vpop.f32.mrb[0].mxu0
    %469 = vmatprep.mubr.bf16.mxu0 0
    %470 = vmatmul.mubr.bf16.gmra.mrb[0].mxu0 %v337
    %v471 = vpop.f32.mrb[0].mxu0
    %v472 = vadd.f32 0.0, %v471
    %v473 = vpop.f32.mrb[0].mxu0
    %v474 = vpop.f32.mrb[0].mxu0
    %v475 = vadd.f32 0.0, %v474
    %v476 = vpop.f32.mrb[0].mxu0
    %477 = vmatprep.mubr.bf16.mxu0 0
    %478 = vmatmul.mubr.bf16.gmra.mrb[0].mxu0 %v338
    %v479 = vpop.f32.mrb[0].mxu0
    %v480 = vadd.f32 0.0, %v479
    %v481 = vpop.f32.mrb[0].mxu0
    %v482 = vpop.f32.mrb[0].mxu0
    %v483 = vadd.f32 0.0, %v482
    %v484 = vpop.f32.mrb[0].mxu0
    %485 = vmatprep.mubr.bf16.mxu0 0
    %486 = vmatmul.mubr.bf16.gmra.mrb[0].mxu0 %v339
    %v487 = vpop.f32.mrb[0].mxu0
    %v488 = vadd.f32 0.0, %v487
    %v489 = vpop.f32.mrb[0].mxu0
    %v490 = vpop.f32.mrb[0].mxu0
    %v491 = vadd.f32 0.0, %v490
    %v492 = vpop.f32.mrb[0].mxu0
    %493 = vmatprep.mubr.bf16.mxu0 0
    %494 = vmatmul.mubr.bf16.gmra.mrb[0].mxu0 %v340
    %v495 = vpop.f32.mrb[0].mxu0
    %v496 = vadd.f32 0.0, %v495
    %v497 = vpop.f32.mrb[0].mxu0
    %v498 = vpop.f32.mrb[0].mxu0
    %v499 = vadd.f32 0.0, %v498
    %v500 = vpop.f32.mrb[0].mxu0
    %501 = vdwg.mxu0
    %vm502 = vcmp.gt.f32.partialorder %v440, 0.0
    %vm503 = vcmp.gt.f32.partialorder %v443, 0.0
    %vm504 = vcmp.gt.f32.partialorder %v448, 0.0
    %vm505 = vcmp.gt.f32.partialorder %v451, 0.0
    %vm506 = vcmp.gt.f32.partialorder %v456, 0.0
    %vm507 = vcmp.gt.f32.partialorder %v459, 0.0
    %vm508 = vcmp.gt.f32.partialorder %v464, 0.0
    %vm509 = vcmp.gt.f32.partialorder %v467, 0.0
    %vm510 = vcmp.gt.f32.partialorder %v472, 0.0
    %vm511 = vcmp.gt.f32.partialorder %v475, 0.0
    %vm512 = vcmp.gt.f32.partialorder %v480, 0.0
    %vm513 = vcmp.gt.f32.partialorder %v483, 0.0
    %vm514 = vcmp.gt.f32.partialorder %v488, 0.0
    %vm515 = vcmp.gt.f32.partialorder %v491, 0.0
    %vm516 = vcmp.gt.f32.partialorder %v496, 0.0
    %vm517 = vcmp.gt.f32.partialorder %v499, 0.0
    %v518 = vmul.f32 %v440, 0.01
    %v519 = vmul.f32 %v443, 0.01
    %v520 = vmul.f32 %v448, 0.01
    %v521 = vmul.f32 %v451, 0.01
    %v522 = vmul.f32 %v456, 0.01
    %v523 = vmul.f32 %v459, 0.01
    %v524 = vmul.f32 %v464, 0.01
    %v525 = vmul.f32 %v467, 0.01
    %v526 = vmul.f32 %v472, 0.01
    %v527 = vmul.f32 %v475, 0.01
    %v528 = vmul.f32 %v480, 0.01
    %v529 = vmul.f32 %v483, 0.01
    %v530 = vmul.f32 %v488, 0.01
    %v531 = vmul.f32 %v491, 0.01
    %v532 = vmul.f32 %v496, 0.01
    %v533 = vmul.f32 %v499, 0.01
    %v534 = vsel %vm502, %v440, %v518
    %v535 = vsel %vm503, %v443, %v519
    %v536 = vsel %vm504, %v448, %v520
    %v537 = vsel %vm505, %v451, %v521
    %v538 = vsel %vm506, %v456, %v522
    %v539 = vsel %vm507, %v459, %v523
    %v540 = vsel %vm508, %v464, %v524
    %v541 = vsel %vm509, %v467, %v525
    %v542 = vsel %vm510, %v472, %v526
    %v543 = vsel %vm511, %v475, %v527
    %v544 = vsel %vm512, %v480, %v528
    %v545 = vsel %vm513, %v483, %v529
    %v546 = vsel %vm514, %v488, %v530
    %v547 = vsel %vm515, %v491, %v531
    %v548 = vsel %vm516, %v496, %v532
    %v549 = vsel %vm517, %v499, %v533
    %v550 = vsel %vm268, 1.0, %v534
    %v551 = vsel %vm268, 1.0, %v535
    %v552 = vsel %vm268, 1.0, %v536
    %v553 = vsel %vm268, 1.0, %v537
    %v554 = vsel %vm268, 1.0, %v538
    %v555 = vsel %vm268, 1.0, %v539
    %v556 = vsel %vm268, 1.0, %v540
    %v557 = vsel %vm268, 1.0, %v541
    %v558 = vsel %vm268, 1.0, %v542
    %v559 = vsel %vm268, 1.0, %v543
    %v560 = vsel %vm268, 1.0, %v544
    %v561 = vsel %vm268, 1.0, %v545
    %v562 = vsel %vm268, 1.0, %v546
    %v563 = vsel %vm268, 1.0, %v547
    %v564 = vsel %vm268, 1.0, %v548
    %v565 = vsel %vm268, 1.0, %v549
    %v566 = vpack.c.bf16 %v551, %v550
    %v567 = vpack.c.bf16 %v553, %v552
    %v568 = vpack.c.bf16 %v555, %v554
    %v569 = vpack.c.bf16 %v557, %v556
    %v570 = vpack.c.bf16 %v559, %v558
    %v571 = vpack.c.bf16 %v561, %v560
    %v572 = vpack.c.bf16 %v563, %v562
    %v573 = vpack.c.bf16 %v565, %v564
    %s574 = scalar_lea.vmem [#allocation2], 64
    %v575 = vld [vmem:[%s574] sm:$0xf]
    %v576 = vld [vmem:[%s574 + $0x4] sm:$0xf]
    %v577 = vld [vmem:[%s574 + $0x8] sm:$0xf]
    %v578 = vld [vmem:[%s574 + $0xc] sm:$0xf]
    %v579 = vld [vmem:[%s574 + $0x10] sm:$0xf]
    %v580 = vld [vmem:[%s574 + $0x14] sm:$0xf]
    %v581 = vld [vmem:[%s574 + $0x18] sm:$0xf]
    %v582 = vld [vmem:[%s574 + $0x1c] sm:$0xf]
    %v583 = vld [vmem:[%s574 + $0x20] sm:$0xf]
    %v584 = vld [vmem:[%s574 + $0x24] sm:$0xf]
    %v585 = vld [vmem:[%s574 + $0x28] sm:$0xf]
    %v586 = vld [vmem:[%s574 + $0x2c] sm:$0xf]
    %v587 = vld [vmem:[%s574 + $0x30] sm:$0xf]
    %v588 = vld [vmem:[%s574 + $0x34] sm:$0xf]
    %v589 = vld [vmem:[%s574 + $0x38] sm:$0xf]
    %v590 = vld [vmem:[%s574 + $0x3c] sm:$0xf]
    %v607 = vunpack.c.l.b16 %v575
    %v608 = vunpack.c.l.b16 %v576
    %v609 = vunpack.c.l.b16 %v577
    %v610 = vunpack.c.l.b16 %v578
    %v611 = vunpack.c.l.b16 %v579
    %v612 = vunpack.c.l.b16 %v580
    %v613 = vunpack.c.l.b16 %v581
    %v614 = vunpack.c.l.b16 %v582
    %v615 = vunpack.c.l.b16 %v583
    %v616 = vunpack.c.l.b16 %v584
    %v617 = vunpack.c.l.b16 %v585
    %v618 = vunpack.c.l.b16 %v586
    %v619 = vunpack.c.l.b16 %v587
    %v620 = vunpack.c.l.b16 %v588
    %v621 = vunpack.c.l.b16 %v589
    %v622 = vunpack.c.l.b16 %v590
    %v623 = vpack.c.b16 %v608, %v607
    %v624 = vpack.c.b16 %v610, %v609
    %v625 = vpack.c.b16 %v612, %v611
    %v626 = vpack.c.b16 %v614, %v613
    %v627 = vpack.c.b16 %v616, %v615
    %v628 = vpack.c.b16 %v618, %v617
    %v629 = vpack.c.b16 %v620, %v619
    %v630 = vpack.c.b16 %v622, %v621
    %639 = vmatprep.subr.bf16.mxu0 0
    %640 = vmatpush1.bf16.msra.mxu0 %v623
    %641 = vmatprep.subr.bf16.mxu0 0
    %642 = vmatpush1.bf16.msra.mxu0 %v624
    %643 = vmatprep.subr.bf16.mxu0 0
    %644 = vmatpush1.bf16.msra.mxu0 %v625
    %645 = vmatprep.subr.bf16.mxu0 0
    %646 = vmatpush1.bf16.msra.mxu0 %v626
    %647 = vmatprep.subr.bf16.mxu0 0
    %648 = vmatpush1.bf16.msra.mxu0 %v627
    %649 = vmatprep.subr.bf16.mxu0 0
    %650 = vmatpush1.bf16.msra.mxu0 %v628
    %651 = vmatprep.subr.bf16.mxu0 0
    %652 = vmatpush1.bf16.msra.mxu0 %v629
    %653 = vmatprep.subr.bf16.mxu0 0
    %654 = vmatpush1.bf16.msra.mxu0 %v630
    %655 = vmatprep.subr.bf16.mxu0 0
    %656 = vmatpush1.bf16.msra.mxu0 0
    %657 = vmatprep.subr.bf16.mxu0 0
    %658 = vmatpush1.bf16.msra.mxu0 0
    %659 = vmatprep.subr.bf16.mxu0 0
    %660 = vmatpush1.bf16.msra.mxu0 0
    %661 = vmatprep.subr.bf16.mxu0 0
    %662 = vmatpush1.bf16.msra.mxu0 0
    %663 = vmatprep.subr.bf16.mxu0 0
    %664 = vmatpush1.bf16.msra.mxu0 0
    %665 = vmatprep.subr.bf16.mxu0 0
    %666 = vmatpush1.bf16.msra.mxu0 0
    %667 = vmatprep.subr.bf16.mxu0 0
    %668 = vmatpush1.bf16.msra.mxu0 0
    %669 = vmatprep.subr.bf16.mxu0 0
    %670 = vmatpush1.bf16.msra.mxu0 0
    %671 = vmatprep.mubr.bf16.mxu0 0
    %672 = vmatmul.mubr.bf16.gmra.mrb[0].mxu0 %v566
    %v673 = vpop.f32.mrb[0].mxu0
    %v674 = vadd.f32 0.0, %v673
    %v675 = vpop.f32.mrb[0].mxu0
    %v676 = vpop.f32.mrb[0].mxu0
    %v677 = vadd.f32 0.0, %v676
    %v678 = vpop.f32.mrb[0].mxu0
    %679 = vmatprep.mubr.bf16.mxu0 0
    %680 = vmatmul.mubr.bf16.gmra.mrb[0].mxu0 %v567
    %v681 = vpop.f32.mrb[0].mxu0
    %v682 = vadd.f32 0.0, %v681
    %v683 = vpop.f32.mrb[0].mxu0
    %v684 = vpop.f32.mrb[0].mxu0
    %v685 = vadd.f32 0.0, %v684
    %v686 = vpop.f32.mrb[0].mxu0
    %687 = vmatprep.mubr.bf16.mxu0 0
    %688 = vmatmul.mubr.bf16.gmra.mrb[0].mxu0 %v568
    %v689 = vpop.f32.mrb[0].mxu0
    %v690 = vadd.f32 0.0, %v689
    %v691 = vpop.f32.mrb[0].mxu0
    %v692 = vpop.f32.mrb[0].mxu0
    %v693 = vadd.f32 0.0, %v692
    %v694 = vpop.f32.mrb[0].mxu0
    %695 = vmatprep.mubr.bf16.mxu0 0
    %696 = vmatmul.mubr.bf16.gmra.mrb[0].mxu0 %v569
    %v697 = vpop.f32.mrb[0].mxu0
    %v698 = vadd.f32 0.0, %v697
    %v699 = vpop.f32.mrb[0].mxu0
    %v700 = vpop.f32.mrb[0].mxu0
    %v701 = vadd.f32 0.0, %v700
    %v702 = vpop.f32.mrb[0].mxu0
    %703 = vmatprep.mubr.bf16.mxu0 0
    %704 = vmatmul.mubr.bf16.gmra.mrb[0].mxu0 %v570
    %v705 = vpop.f32.mrb[0].mxu0
    %v706 = vadd.f32 0.0, %v705
    %v707 = vpop.f32.mrb[0].mxu0
    %v708 = vpop.f32.mrb[0].mxu0
    %v709 = vadd.f32 0.0, %v708
    %v710 = vpop.f32.mrb[0].mxu0
    %711 = vmatprep.mubr.bf16.mxu0 0
    %712 = vmatmul.mubr.bf16.gmra.mrb[0].mxu0 %v571
    %v713 = vpop.f32.mrb[0].mxu0
    %v714 = vadd.f32 0.0, %v713
    %v715 = vpop.f32.mrb[0].mxu0
    %v716 = vpop.f32.mrb[0].mxu0
    %v717 = vadd.f32 0.0, %v716
    %v718 = vpop.f32.mrb[0].mxu0
    %719 = vmatprep.mubr.bf16.mxu0 0
    %720 = vmatmul.mubr.bf16.gmra.mrb[0].mxu0 %v572
    %v721 = vpop.f32.mrb[0].mxu0
    %v722 = vadd.f32 0.0, %v721
    %v723 = vpop.f32.mrb[0].mxu0
    %v724 = vpop.f32.mrb[0].mxu0
    %v725 = vadd.f32 0.0, %v724
    %v726 = vpop.f32.mrb[0].mxu0
    %727 = vmatprep.mubr.bf16.mxu0 0
    %728 = vmatmul.mubr.bf16.gmra.mrb[0].mxu0 %v573
    %v729 = vpop.f32.mrb[0].mxu0
    %v730 = vadd.f32 0.0, %v729
    %v731 = vpop.f32.mrb[0].mxu0
    %v732 = vpop.f32.mrb[0].mxu0
    %v733 = vadd.f32 0.0, %v732
    %v734 = vpop.f32.mrb[0].mxu0
    %735 = vdwg.mxu0
    %vm736 = vcmp.gt.f32.partialorder %v674, 0.0
    %vm737 = vcmp.gt.f32.partialorder %v677, 0.0
    %vm738 = vcmp.gt.f32.partialorder %v682, 0.0
    %vm739 = vcmp.gt.f32.partialorder %v685, 0.0
    %vm740 = vcmp.gt.f32.partialorder %v690, 0.0
    %vm741 = vcmp.gt.f32.partialorder %v693, 0.0
    %vm742 = vcmp.gt.f32.partialorder %v698, 0.0
    %vm743 = vcmp.gt.f32.partialorder %v701, 0.0
    %vm744 = vcmp.gt.f32.partialorder %v706, 0.0
    %vm745 = vcmp.gt.f32.partialorder %v709, 0.0
    %vm746 = vcmp.gt.f32.partialorder %v714, 0.0
    %vm747 = vcmp.gt.f32.partialorder %v717, 0.0
    %vm748 = vcmp.gt.f32.partialorder %v722, 0.0
    %vm749 = vcmp.gt.f32.partialorder %v725, 0.0
    %vm750 = vcmp.gt.f32.partialorder %v730, 0.0
    %vm751 = vcmp.gt.f32.partialorder %v733, 0.0
    %v752 = vmul.f32 %v674, 0.01
    %v753 = vmul.f32 %v677, 0.01
    %v754 = vmul.f32 %v682, 0.01
    %v755 = vmul.f32 %v685, 0.01
    %v756 = vmul.f32 %v690, 0.01
    %v757 = vmul.f32 %v693, 0.01
    %v758 = vmul.f32 %v698, 0.01
    %v759 = vmul.f32 %v701, 0.01
    %v760 = vmul.f32 %v706, 0.01
    %v761 = vmul.f32 %v709, 0.01
    %v762 = vmul.f32 %v714, 0.01
    %v763 = vmul.f32 %v717, 0.01
    %v764 = vmul.f32 %v722, 0.01
    %v765 = vmul.f32 %v725, 0.01
    %v766 = vmul.f32 %v730, 0.01
    %v767 = vmul.f32 %v733, 0.01
    %v768 = vsel %vm736, %v674, %v752
    %v769 = vsel %vm737, %v677, %v753
    %v770 = vsel %vm738, %v682, %v754
    %v771 = vsel %vm739, %v685, %v755
    %v772 = vsel %vm740, %v690, %v756
    %v773 = vsel %vm741, %v693, %v757
    %v774 = vsel %vm742, %v698, %v758
    %v775 = vsel %vm743, %v701, %v759
    %v776 = vsel %vm744, %v706, %v760
    %v777 = vsel %vm745, %v709, %v761
    %v778 = vsel %vm746, %v714, %v762
    %v779 = vsel %vm747, %v717, %v763
    %v780 = vsel %vm748, %v722, %v764
    %v781 = vsel %vm749, %v725, %v765
    %v782 = vsel %vm750, %v730, %v766
    %v783 = vsel %vm751, %v733, %v767
    %v784 = vsel %vm268, 1.0, %v768
    %v785 = vsel %vm268, 1.0, %v769
    %v786 = vsel %vm268, 1.0, %v770
    %v787 = vsel %vm268, 1.0, %v771
    %v788 = vsel %vm268, 1.0, %v772
    %v789 = vsel %vm268, 1.0, %v773
    %v790 = vsel %vm268, 1.0, %v774
    %v791 = vsel %vm268, 1.0, %v775
    %v792 = vsel %vm268, 1.0, %v776
    %v793 = vsel %vm268, 1.0, %v777
    %v794 = vsel %vm268, 1.0, %v778
    %v795 = vsel %vm268, 1.0, %v779
    %v796 = vsel %vm268, 1.0, %v780
    %v797 = vsel %vm268, 1.0, %v781
    %v798 = vsel %vm268, 1.0, %v782
    %v799 = vsel %vm268, 1.0, %v783
    %v800 = vpack.c.bf16 %v785, %v784
    %v801 = vpack.c.bf16 %v787, %v786
    %v802 = vpack.c.bf16 %v789, %v788
    %v803 = vpack.c.bf16 %v791, %v790
    %v804 = vpack.c.bf16 %v793, %v792
    %v805 = vpack.c.bf16 %v795, %v794
    %v806 = vpack.c.bf16 %v797, %v796
    %v807 = vpack.c.bf16 %v799, %v798
    %s808 = scalar_lea.vmem [#allocation2], 128
    %v809 = vld [vmem:[%s808] sm:$0xf]
    %v810 = vld [vmem:[%s808 + $0x4] sm:$0xf]
    %v811 = vld [vmem:[%s808 + $0x8] sm:$0xf]
    %v812 = vld [vmem:[%s808 + $0xc] sm:$0xf]
    %v813 = vld [vmem:[%s808 + $0x10] sm:$0xf]
    %v814 = vld [vmem:[%s808 + $0x14] sm:$0xf]
    %v815 = vld [vmem:[%s808 + $0x18] sm:$0xf]
    %v816 = vld [vmem:[%s808 + $0x1c] sm:$0xf]
    %v817 = vld [vmem:[%s808 + $0x20] sm:$0xf]
    %v818 = vld [vmem:[%s808 + $0x24] sm:$0xf]
    %v819 = vld [vmem:[%s808 + $0x28] sm:$0xf]
    %v820 = vld [vmem:[%s808 + $0x2c] sm:$0xf]
    %v821 = vld [vmem:[%s808 + $0x30] sm:$0xf]
    %v822 = vld [vmem:[%s808 + $0x34] sm:$0xf]
    %v823 = vld [vmem:[%s808 + $0x38] sm:$0xf]
    %v824 = vld [vmem:[%s808 + $0x3c] sm:$0xf]
    %v841 = vunpack.c.l.b16 %v809
    %v842 = vunpack.c.l.b16 %v810
    %v843 = vunpack.c.l.b16 %v811
    %v844 = vunpack.c.l.b16 %v812
    %v845 = vunpack.c.l.b16 %v813
    %v846 = vunpack.c.l.b16 %v814
    %v847 = vunpack.c.l.b16 %v815
    %v848 = vunpack.c.l.b16 %v816
    %v849 = vunpack.c.l.b16 %v817
    %v850 = vunpack.c.l.b16 %v818
    %v851 = vunpack.c.l.b16 %v819
    %v852 = vunpack.c.l.b16 %v820
    %v853 = vunpack.c.l.b16 %v821
    %v854 = vunpack.c.l.b16 %v822
    %v855 = vunpack.c.l.b16 %v823
    %v856 = vunpack.c.l.b16 %v824
    %v857 = vpack.c.b16 %v842, %v841
    %v858 = vpack.c.b16 %v844, %v843
    %v859 = vpack.c.b16 %v846, %v845
    %v860 = vpack.c.b16 %v848, %v847
    %v861 = vpack.c.b16 %v850, %v849
    %v862 = vpack.c.b16 %v852, %v851
    %v863 = vpack.c.b16 %v854, %v853
    %v864 = vpack.c.b16 %v856, %v855
    %873 = vmatprep.subr.bf16.mxu0 0
    %874 = vmatpush1.bf16.msra.mxu0 %v857
    %875 = vmatprep.subr.bf16.mxu0 0
    %876 = vmatpush1.bf16.msra.mxu0 %v858
    %877 = vmatprep.subr.bf16.mxu0 0
    %878 = vmatpush1.bf16.msra.mxu0 %v859
    %879 = vmatprep.subr.bf16.mxu0 0
    %880 = vmatpush1.bf16.msra.mxu0 %v860
    %881 = vmatprep.subr.bf16.mxu0 0
    %882 = vmatpush1.bf16.msra.mxu0 %v861
    %883 = vmatprep.subr.bf16.mxu0 0
    %884 = vmatpush1.bf16.msra.mxu0 %v862
    %885 = vmatprep.subr.bf16.mxu0 0
    %886 = vmatpush1.bf16.msra.mxu0 %v863
    %887 = vmatprep.subr.bf16.mxu0 0
    %888 = vmatpush1.bf16.msra.mxu0 %v864
    %889 = vmatprep.subr.bf16.mxu0 0
    %890 = vmatpush1.bf16.msra.mxu0 0
    %891 = vmatprep.subr.bf16.mxu0 0
    %892 = vmatpush1.bf16.msra.mxu0 0
    %893 = vmatprep.subr.bf16.mxu0 0
    %894 = vmatpush1.bf16.msra.mxu0 0
    %895 = vmatprep.subr.bf16.mxu0 0
    %896 = vmatpush1.bf16.msra.mxu0 0
    %897 = vmatprep.subr.bf16.mxu0 0
    %898 = vmatpush1.bf16.msra.mxu0 0
    %899 = vmatprep.subr.bf16.mxu0 0
    %900 = vmatpush1.bf16.msra.mxu0 0
    %901 = vmatprep.subr.bf16.mxu0 0
    %902 = vmatpush1.bf16.msra.mxu0 0
    %903 = vmatprep.subr.bf16.mxu0 0
    %904 = vmatpush1.bf16.msra.mxu0 0
    %905 = vmatprep.mubr.bf16.mxu0 0
    %906 = vmatmul.mubr.bf16.gmra.mrb[0].mxu0 %v800
    %v907 = vpop.f32.mrb[0].mxu0
    %v908 = vadd.f32 0.0, %v907
    %v909 = vpop.f32.mrb[0].mxu0
    %v910 = vpop.f32.mrb[0].mxu0
    %v911 = vadd.f32 0.0, %v910
    %v912 = vpop.f32.mrb[0].mxu0
    %913 = vmatprep.mubr.bf16.mxu0 0
    %914 = vmatmul.mubr.bf16.gmra.mrb[0].mxu0 %v801
    %v915 = vpop.f32.mrb[0].mxu0
    %v916 = vadd.f32 0.0, %v915
    %v917 = vpop.f32.mrb[0].mxu0
    %v918 = vpop.f32.mrb[0].mxu0
    %v919 = vadd.f32 0.0, %v918
    %v920 = vpop.f32.mrb[0].mxu0
    %921 = vmatprep.mubr.bf16.mxu0 0
    %922 = vmatmul.mubr.bf16.gmra.mrb[0].mxu0 %v802
    %v923 = vpop.f32.mrb[0].mxu0
    %v924 = vadd.f32 0.0, %v923
    %v925 = vpop.f32.mrb[0].mxu0
    %v926 = vpop.f32.mrb[0].mxu0
    %v927 = vadd.f32 0.0, %v926
    %v928 = vpop.f32.mrb[0].mxu0
    %929 = vmatprep.mubr.bf16.mxu0 0
    %930 = vmatmul.mubr.bf16.gmra.mrb[0].mxu0 %v803
    %v931 = vpop.f32.mrb[0].mxu0
    %v932 = vadd.f32 0.0, %v931
    %v933 = vpop.f32.mrb[0].mxu0
    %v934 = vpop.f32.mrb[0].mxu0
    %v935 = vadd.f32 0.0, %v934
    %v936 = vpop.f32.mrb[0].mxu0
    %937 = vmatprep.mubr.bf16.mxu0 0
    %938 = vmatmul.mubr.bf16.gmra.mrb[0].mxu0 %v804
    %v939 = vpop.f32.mrb[0].mxu0
    %v940 = vadd.f32 0.0, %v939
    %v941 = vpop.f32.mrb[0].mxu0
    %v942 = vpop.f32.mrb[0].mxu0
    %v943 = vadd.f32 0.0, %v942
    %v944 = vpop.f32.mrb[0].mxu0
    %945 = vmatprep.mubr.bf16.mxu0 0
    %946 = vmatmul.mubr.bf16.gmra.mrb[0].mxu0 %v805
    %v947 = vpop.f32.mrb[0].mxu0
    %v948 = vadd.f32 0.0, %v947
    %v949 = vpop.f32.mrb[0].mxu0
    %v950 = vpop.f32.mrb[0].mxu0
    %v951 = vadd.f32 0.0, %v950
    %v952 = vpop.f32.mrb[0].mxu0
    %953 = vmatprep.mubr.bf16.mxu0 0
    %954 = vmatmul.mubr.bf16.gmra.mrb[0].mxu0 %v806
    %v955 = vpop.f32.mrb[0].mxu0
    %v956 = vadd.f32 0.0, %v955
    %v957 = vpop.f32.mrb[0].mxu0
    %v958 = vpop.f32.mrb[0].mxu0
    %v959 = vadd.f32 0.0, %v958
    %v960 = vpop.f32.mrb[0].mxu0
    %961 = vmatprep.mubr.bf16.mxu0 0
    %962 = vmatmul.mubr.bf16.gmra.mrb[0].mxu0 %v807
    %v963 = vpop.f32.mrb[0].mxu0
    %v964 = vadd.f32 0.0, %v963
    %v965 = vpop.f32.mrb[0].mxu0
    %v966 = vpop.f32.mrb[0].mxu0
    %v967 = vadd.f32 0.0, %v966
    %v968 = vpop.f32.mrb[0].mxu0
    %969 = vdwg.mxu0
    %v970 = vmul.f32 %v908, 0.5
    %v971 = vmul.f32 %v911, 0.5
    %v972 = vmul.f32 %v916, 0.5
    %v973 = vmul.f32 %v919, 0.5
    %v974 = vmul.f32 %v924, 0.5
    %v975 = vmul.f32 %v927, 0.5
    %v976 = vmul.f32 %v932, 0.5
    %v977 = vmul.f32 %v935, 0.5
    %v978 = vmul.f32 %v940, 0.5
    %v979 = vmul.f32 %v943, 0.5
    %v980 = vmul.f32 %v948, 0.5
    %v981 = vmul.f32 %v951, 0.5
    %v982 = vmul.f32 %v956, 0.5
    %v983 = vmul.f32 %v959, 0.5
    %v984 = vmul.f32 %v964, 0.5
    %v985 = vmul.f32 %v967, 0.5
    %v986 = vtanh.pop %v970
    %v987 = vtanh.pop %v971
    %v988 = vtanh.pop %v972
    %v989 = vtanh.pop %v973
    %v990 = vtanh.pop %v974
    %v991 = vtanh.pop %v975
    %v992 = vtanh.pop %v976
    %v993 = vtanh.pop %v977
    %v994 = vtanh.pop %v978
    %v995 = vtanh.pop %v979
    %v996 = vtanh.pop %v980
    %v997 = vtanh.pop %v981
    %v998 = vtanh.pop %v982
    %v999 = vtanh.pop %v983
    %v1000 = vtanh.pop %v984
    %v1001 = vtanh.pop %v985
    %v1002 = vmul.f32 %v986, 0.5
    %v1003 = vmul.f32 %v987, 0.5
    %v1004 = vmul.f32 %v988, 0.5
    %v1005 = vmul.f32 %v989, 0.5
    %v1006 = vmul.f32 %v990, 0.5
    %v1007 = vmul.f32 %v991, 0.5
    %v1008 = vmul.f32 %v992, 0.5
    %v1009 = vmul.f32 %v993, 0.5
    %v1010 = vmul.f32 %v994, 0.5
    %v1011 = vmul.f32 %v995, 0.5
    %v1012 = vmul.f32 %v996, 0.5
    %v1013 = vmul.f32 %v997, 0.5
    %v1014 = vmul.f32 %v998, 0.5
    %v1015 = vmul.f32 %v999, 0.5
    %v1016 = vmul.f32 %v1000, 0.5
    %v1017 = vmul.f32 %v1001, 0.5
    %v1018 = vadd.f32 %v1002, 0.5
    %v1019 = vadd.f32 %v1003, 0.5
    %v1020 = vadd.f32 %v1004, 0.5
    %v1021 = vadd.f32 %v1005, 0.5
    %v1022 = vadd.f32 %v1006, 0.5
    %v1023 = vadd.f32 %v1007, 0.5
    %v1024 = vadd.f32 %v1008, 0.5
    %v1025 = vadd.f32 %v1009, 0.5
    %v1026 = vadd.f32 %v1010, 0.5
    %v1027 = vadd.f32 %v1011, 0.5
    %v1028 = vadd.f32 %v1012, 0.5
    %v1029 = vadd.f32 %v1013, 0.5
    %v1030 = vadd.f32 %v1014, 0.5
    %v1031 = vadd.f32 %v1015, 0.5
    %v1032 = vadd.f32 %v1016, 0.5
    %v1033 = vadd.f32 %v1017, 0.5
    %vm1034 = vcmask 7168
    %1035 = vst.msk [vmem:[%s3] sm:$0xff] %vm1034, %v1018
    %1036 = vst.msk [vmem:[%s3 + $0x8] sm:$0xff] %vm1034, %v1019
    %1037 = vst.msk [vmem:[%s3 + $0x10] sm:$0xff] %vm1034, %v1020
    %1038 = vst.msk [vmem:[%s3 + $0x18] sm:$0xff] %vm1034, %v1021
    %1039 = vst.msk [vmem:[%s3 + $0x20] sm:$0xff] %vm1034, %v1022
    %1040 = vst.msk [vmem:[%s3 + $0x28] sm:$0xff] %vm1034, %v1023
    %1041 = vst.msk [vmem:[%s3 + $0x30] sm:$0xff] %vm1034, %v1024
    %1042 = vst.msk [vmem:[%s3 + $0x38] sm:$0xff] %vm1034, %v1025
    %1043 = vst.msk [vmem:[%s3 + $0x40] sm:$0xff] %vm1034, %v1026
    %1044 = vst.msk [vmem:[%s3 + $0x48] sm:$0xff] %vm1034, %v1027
    %1045 = vst.msk [vmem:[%s3 + $0x50] sm:$0xff] %vm1034, %v1028
    %1046 = vst.msk [vmem:[%s3 + $0x58] sm:$0xff] %vm1034, %v1029
    %1047 = vst.msk [vmem:[%s3 + $0x60] sm:$0xff] %vm1034, %v1030
    %1048 = vst.msk [vmem:[%s3 + $0x68] sm:$0xff] %vm1034, %v1031
    %1049 = vst.msk [vmem:[%s3 + $0x70] sm:$0xff] %vm1034, %v1032
    %1050 = vst.msk [vmem:[%s3 + $0x78] sm:$0xff] %vm1034, %v1033
    // Predicated region
    $region18: #{gan_discriminator_forward.1} parent=1 // pred_check
      _
    $region19: #{gan_discriminator_forward.1} parent=1 // pred_check_branch
      %1052 = sbr.rel (0) target = $region21
    $region20: #{gan_discriminator_forward.1} parent=1 // pred_region
      _
    $region21: #{gan_discriminator_forward.1} parent=1 // pred_fallthru
      _
    // Predicated region
    $region22: #{gan_discriminator_forward.1} parent=1 // pred_check
      _
    $region23: #{gan_discriminator_forward.1} parent=1 // pred_check_branch
      %1054 = sbr.rel (0) target = $region25
    $region24: #{gan_discriminator_forward.1} parent=1 // pred_region
      _
    $region25: #{gan_discriminator_forward.1} parent=1 // pred_fallthru
      _
    %1055 = vsyncpa [#allocation3], 1

</llo_original>
